<compile_context>
chip_gen: v7x
topology: tpu7x:2x2x1
jax: 0.10.0
libtpu: 0.0.40
codegen_flags: <defaults>
</compile_context>

<pallas_src>
import functools
import math

import jax
import jax.numpy as jnp
from jax.experimental import pallas as pl
from jax.experimental.pallas import tpu as pltpu

LANE = 128
SUBLANE = 8
MAX_BLOCK_ROWS = 512  # (512, 128) f32 tile = 256 KiB -> tiny vs. 64 MiB VMEM (v7x)


def _round_up(x, m):
    return (x + m - 1) // m * m


# ----------------------------------------------------------------------------
# Kernel: one (TM, Dp) token tile through the full FFN + residual + LayerNorm.
# ----------------------------------------------------------------------------
def ffn_kernel(x_ref, w1_ref, b1_ref, w2_ref, b2_ref, g_ref, beta_ref, o_ref,
               *, inv_d, eps):
    x = x_ref[...]                                                    # (TM, Dp)
    h = jnp.dot(x, w1_ref[...], preferred_element_type=jnp.float32)   # (TM, Hp)
    h = jnp.maximum(h + b1_ref[...], 0.0)                             # relu(w_1(x))
    y = jnp.dot(h, w2_ref[...], preferred_element_type=jnp.float32)   # (TM, Dp)
    y = y + b2_ref[...] + x                                           # +bias, +residual (dropout=id)
    # Padded lanes of y are exactly zero (zero-padded x, weights, biases), so
    # lane-wide sums equal sums over the true D features; divide by true D.
    mean = jnp.sum(y, axis=-1, keepdims=True) * inv_d
    ex2 = jnp.sum(y * y, axis=-1, keepdims=True) * inv_d
    var = ex2 - mean * mean                                           # biased variance (PyTorch LN)
    yn = (y - mean) * jax.lax.rsqrt(var + eps)
    # gamma/beta are zero on padded lanes -> padded output lanes stay zero.
    o_ref[...] = yn * g_ref[...] + beta_ref[...]


# ----------------------------------------------------------------------------
# Parameters (PyTorch nn.Linear / nn.LayerNorm style) + one-time lane padding.
# ----------------------------------------------------------------------------
def init_params(key, d_in, d_hid):
    k1, k2, k3, k4 = jax.random.split(key, 4)
    lim1 = 1.0 / math.sqrt(d_in)
    lim2 = 1.0 / math.sqrt(d_hid)
    return dict(
        w1=jax.random.uniform(k1, (d_in, d_hid), jnp.float32, -lim1, lim1),
        b1=jax.random.uniform(k2, (d_hid,), jnp.float32, -lim1, lim1),
        w2=jax.random.uniform(k3, (d_hid, d_in), jnp.float32, -lim2, lim2),
        b2=jax.random.uniform(k4, (d_in,), jnp.float32, -lim2, lim2),
        gamma=jnp.ones((d_in,), jnp.float32),
        beta=jnp.zeros((d_in,), jnp.float32),
    )


def pad_params(params):
    """Zero-pad all parameters to 128-lane-dense shapes (done once, outside jit)."""
    d_in, d_hid = params["w1"].shape
    dp, hp = _round_up(d_in, LANE), _round_up(d_hid, LANE)
    pad2 = lambda a, r, c: jnp.pad(a, ((0, r - a.shape[0]), (0, c - a.shape[1])))
    pad1 = lambda a, c: jnp.pad(a, (0, c - a.shape[0])).reshape(1, c)
    return (pad2(params["w1"], dp, hp),
            pad1(params["b1"], hp),
            pad2(params["w2"], hp, dp),
            pad1(params["b2"], dp),
            pad1(params["gamma"], dp),
            pad1(params["beta"], dp))


# ----------------------------------------------------------------------------
# Wrapper: flatten leading dims, lane/row pad, single pallas_call, un-pad.
# ----------------------------------------------------------------------------
def positionwise_feed_forward(x, padded_params, d_in, *, eps=1e-6):
    w1p, b1p, w2p, b2p, gp, bp = padded_params
    dp, hp = w1p.shape

    orig_shape = x.shape
    orig_dtype = x.dtype
    t = math.prod(orig_shape[:-1])
    x2 = x.reshape(t, d_in).astype(jnp.float32)

    # Biggest row tile that fits comfortably in VMEM without over-padding tiny T.
    block_rows = min(MAX_BLOCK_ROWS, _round_up(t, SUBLANE))
    t_pad = _round_up(t, block_rows)
    x_p = jnp.pad(x2, ((0, t_pad - t), (0, dp - d_in)))   # row/lane zero-pad

    const = lambda i: (0, 0)
    row = lambda i: (i, 0)

    out = pl.pallas_call(
        functools.partial(ffn_kernel, inv_d=1.0 / d_in, eps=eps),
        out_shape=jax.ShapeDtypeStruct((t_pad, dp), jnp.float32),
        grid=(t_pad // block_rows,),
        in_specs=[
            pl.BlockSpec((block_rows, dp), row),   # tokens (tiled along T)
            pl.BlockSpec((dp, hp), const),         # W1   (VMEM-resident)
            pl.BlockSpec((1, hp), const),          # b1
            pl.BlockSpec((hp, dp), const),         # W2
            pl.BlockSpec((1, dp), const),          # b2
            pl.BlockSpec((1, dp), const),          # gamma
            pl.BlockSpec((1, dp), const),          # beta
        ],
        out_specs=pl.BlockSpec((block_rows, dp), row),
        input_output_aliases={0: 0},               # tokens rewritten in place
        compiler_params=pltpu.CompilerParams(
            dimension_semantics=("parallel",)),
    )(x_p, w1p, b1p, w2p, b2p, gp, bp)

    return out[:t, :d_in].reshape(orig_shape).astype(orig_dtype)


# ----------------------------------------------------------------------------
if __name__ == "__main__":
    d_in, d_hid = 16, 32          # module hyper-parameters (d_in, d_hid)
    B, S = 2, 8                   # batch of token sequences: x is (B, S, d_in)

    key = jax.random.PRNGKey(0)
    kx, kp = jax.random.split(key)
    x = jax.random.normal(kx, (B, S, d_in), jnp.float32)

    params = init_params(kp, d_in, d_hid)
    padded = pad_params(params)

    fwd = jax.jit(functools.partial(positionwise_feed_forward, d_in=d_in))
    y = fwd(x, padded)
    jax.block_until_ready(y)

    # Pure-JAX reference (eval mode: dropout = identity).
    def ref(x, p):
        h = jnp.maximum(x @ p["w1"] + p["b1"], 0.0)
        r = h @ p["w2"] + p["b2"] + x
        mean = r.mean(-1, keepdims=True)
        var = ((r - mean) ** 2).mean(-1, keepdims=True)
        return (r - mean) * jax.lax.rsqrt(var + 1e-6) * p["gamma"] + p["beta"]

    y_ref = ref(x, params)
    assert y.shape == x.shape
    assert jnp.allclose(y, y_ref, atol=1e-5, rtol=1e-5), \
        float(jnp.max(jnp.abs(y - y_ref)))
    print("KERNEL_OK")
</pallas_src>

<mosaic_0001>
module attributes {stable_mosaic.version = 11 : i64} {
  func.func @ffn_kernel(%arg0: i32, %arg1: memref<16x128xf32, #tpu.memory_space<vmem>>, %arg2: memref<128x128xf32, #tpu.memory_space<vmem>>, %arg3: memref<1x128xf32, #tpu.memory_space<vmem>>, %arg4: memref<128x128xf32, #tpu.memory_space<vmem>>, %arg5: memref<1x128xf32, #tpu.memory_space<vmem>>, %arg6: memref<1x128xf32, #tpu.memory_space<vmem>>, %arg7: memref<1x128xf32, #tpu.memory_space<vmem>>, %arg8: memref<16x128xf32, #tpu.memory_space<vmem>>) attributes {dimension_semantics = [#tpu.dimension_semantics<parallel>], iteration_bounds = array<i64: 1>, scalar_prefetch = 0 : i64, scratch_operands = 0 : i64, tpu.core_type = #tpu.core_type<tc>, window_params = [{transform_indices = @transform_0, window_bounds = array<i64: 16, 128>}, {pipeline_mode = #tpu.pipeline_mode<synchronous>, transform_indices = @transform_1, window_bounds = array<i64: 128, 128>}, {pipeline_mode = #tpu.pipeline_mode<synchronous>, transform_indices = @transform_2, window_bounds = array<i64: 1, 128>}, {pipeline_mode = #tpu.pipeline_mode<synchronous>, transform_indices = @transform_3, window_bounds = array<i64: 128, 128>}, {pipeline_mode = #tpu.pipeline_mode<synchronous>, transform_indices = @transform_4, window_bounds = array<i64: 1, 128>}, {pipeline_mode = #tpu.pipeline_mode<synchronous>, transform_indices = @transform_5, window_bounds = array<i64: 1, 128>}, {pipeline_mode = #tpu.pipeline_mode<synchronous>, transform_indices = @transform_6, window_bounds = array<i64: 1, 128>}, {transform_indices = @transform_7, window_bounds = array<i64: 16, 128>}]} {
    %c0 = arith.constant 0 : index
    %c0_0 = arith.constant 0 : index
    %0 = vector.load %arg1[%c0, %c0_0] : memref<16x128xf32, #tpu.memory_space<vmem>>, vector<16x128xf32>
    %c0_1 = arith.constant 0 : index
    %c0_2 = arith.constant 0 : index
    %1 = vector.load %arg2[%c0_1, %c0_2] : memref<128x128xf32, #tpu.memory_space<vmem>>, vector<128x128xf32>
    %cst = arith.constant dense<0.000000e+00> : vector<16x128xf32>
    %2 = tpu.matmul %0, %1, %cst {dimension_numbers = #tpu.dot_dimension_numbers<[1], [0], [0], [1], [0, 0, 1, 1], [], []>} : vector<16x128xf32>, vector<128x128xf32>, vector<16x128xf32> -> vector<16x128xf32>
    %c0_3 = arith.constant 0 : index
    %c0_4 = arith.constant 0 : index
    %3 = vector.load %arg3[%c0_3, %c0_4] : memref<1x128xf32, #tpu.memory_space<vmem>>, vector<1x128xf32>
    %4 = vector.broadcast %3 : vector<1x128xf32> to vector<16x128xf32>
    %5 = arith.addf %2, %4 : vector<16x128xf32>
    %cst_5 = arith.constant 0.000000e+00 : f32
    %6 = vector.broadcast %cst_5 : f32 to vector<16x128xf32>
    %7 = arith.maximumf %5, %6 : vector<16x128xf32>
    %c0_6 = arith.constant 0 : index
    %c0_7 = arith.constant 0 : index
    %8 = vector.load %arg4[%c0_6, %c0_7] : memref<128x128xf32, #tpu.memory_space<vmem>>, vector<128x128xf32>
    %cst_8 = arith.constant dense<0.000000e+00> : vector<16x128xf32>
    %9 = tpu.matmul %7, %8, %cst_8 {dimension_numbers = #tpu.dot_dimension_numbers<[1], [0], [0], [1], [0, 0, 1, 1], [], []>} : vector<16x128xf32>, vector<128x128xf32>, vector<16x128xf32> -> vector<16x128xf32>
    %c0_9 = arith.constant 0 : index
    %c0_10 = arith.constant 0 : index
    %10 = vector.load %arg5[%c0_9, %c0_10] : memref<1x128xf32, #tpu.memory_space<vmem>>, vector<1x128xf32>
    %11 = vector.broadcast %10 : vector<1x128xf32> to vector<16x128xf32>
    %12 = arith.addf %9, %11 : vector<16x128xf32>
    %13 = arith.addf %12, %0 : vector<16x128xf32>
    %cst_11 = arith.constant dense<0.000000e+00> : vector<16xf32>
    %14 = vector.multi_reduction <add>, %13, %cst_11 [1] : vector<16x128xf32> to vector<16xf32>
    %15 = vector.shape_cast %14 : vector<16xf32> to vector<16x1xf32>
    %cst_12 = arith.constant 6.250000e-02 : f32
    %16 = vector.broadcast %cst_12 : f32 to vector<16x1xf32>
    %17 = arith.mulf %15, %16 : vector<16x1xf32>
    %18 = arith.mulf %13, %13 : vector<16x128xf32>
    %cst_13 = arith.constant dense<0.000000e+00> : vector<16xf32>
    %19 = vector.multi_reduction <add>, %18, %cst_13 [1] : vector<16x128xf32> to vector<16xf32>
    %20 = vector.shape_cast %19 : vector<16xf32> to vector<16x1xf32>
    %cst_14 = arith.constant 6.250000e-02 : f32
    %21 = vector.broadcast %cst_14 : f32 to vector<16x1xf32>
    %22 = arith.mulf %20, %21 : vector<16x1xf32>
    %23 = arith.mulf %17, %17 : vector<16x1xf32>
    %24 = arith.subf %22, %23 : vector<16x1xf32>
    %25 = vector.broadcast %17 : vector<16x1xf32> to vector<16x128xf32>
    %26 = arith.subf %13, %25 : vector<16x128xf32>
    %cst_15 = arith.constant 9.99999997E-7 : f32
    %27 = vector.broadcast %cst_15 : f32 to vector<16x1xf32>
    %28 = arith.addf %24, %27 : vector<16x1xf32>
    %29 = math.rsqrt %28 : vector<16x1xf32>
    %30 = vector.broadcast %29 : vector<16x1xf32> to vector<16x128xf32>
    %31 = arith.mulf %26, %30 : vector<16x128xf32>
    %c0_16 = arith.constant 0 : index
    %c0_17 = arith.constant 0 : index
    %32 = vector.load %arg6[%c0_16, %c0_17] : memref<1x128xf32, #tpu.memory_space<vmem>>, vector<1x128xf32>
    %33 = vector.broadcast %32 : vector<1x128xf32> to vector<16x128xf32>
    %34 = arith.mulf %31, %33 : vector<16x128xf32>
    %c0_18 = arith.constant 0 : index
    %c0_19 = arith.constant 0 : index
    %35 = vector.load %arg7[%c0_18, %c0_19] : memref<1x128xf32, #tpu.memory_space<vmem>>, vector<1x128xf32>
    %36 = vector.broadcast %35 : vector<1x128xf32> to vector<16x128xf32>
    %37 = arith.addf %34, %36 : vector<16x128xf32>
    %c0_20 = arith.constant 0 : index
    %c0_21 = arith.constant 0 : index
    %38 = vector.load %arg8[%c0_20, %c0_21] : memref<16x128xf32, #tpu.memory_space<vmem>>, vector<16x128xf32>
    tpu.vector_store %arg8[%c0_20, %c0_21], %37 {strides = array<i32>} : memref<16x128xf32, #tpu.memory_space<vmem>>, vector<16x128xf32>,
    return
  }
  func.func @transform_0(%arg0: i32) -> (i32, i32) {
    %c0_i32 = arith.constant 0 : i32
    %c0_i32_0 = arith.constant 0 : i32
    return %arg0, %c0_i32 : i32, i32
  }
  func.func @transform_1(%arg0: i32) -> (i32, i32) {
    %c0_i32 = arith.constant 0 : i32
    %c0_i32_0 = arith.constant 0 : i32
    %c0_i32_1 = arith.constant 0 : i32
    return %c0_i32, %c0_i32_0 : i32, i32
  }
  func.func @transform_2(%arg0: i32) -> (i32, i32) {
    %c0_i32 = arith.constant 0 : i32
    %c0_i32_0 = arith.constant 0 : i32
    %c0_i32_1 = arith.constant 0 : i32
    return %c0_i32, %c0_i32_0 : i32, i32
  }
  func.func @transform_3(%arg0: i32) -> (i32, i32) {
    %c0_i32 = arith.constant 0 : i32
    %c0_i32_0 = arith.constant 0 : i32
    %c0_i32_1 = arith.constant 0 : i32
    return %c0_i32, %c0_i32_0 : i32, i32
  }
  func.func @transform_4(%arg0: i32) -> (i32, i32) {
    %c0_i32 = arith.constant 0 : i32
    %c0_i32_0 = arith.constant 0 : i32
    %c0_i32_1 = arith.constant 0 : i32
    return %c0_i32, %c0_i32_0 : i32, i32
  }
  func.func @transform_5(%arg0: i32) -> (i32, i32) {
    %c0_i32 = arith.constant 0 : i32
    %c0_i32_0 = arith.constant 0 : i32
    %c0_i32_1 = arith.constant 0 : i32
    return %c0_i32, %c0_i32_0 : i32, i32
  }
  func.func @transform_6(%arg0: i32) -> (i32, i32) {
    %c0_i32 = arith.constant 0 : i32
    %c0_i32_0 = arith.constant 0 : i32
    %c0_i32_1 = arith.constant 0 : i32
    return %c0_i32, %c0_i32_0 : i32, i32
  }
  func.func @transform_7(%arg0: i32) -> (i32, i32) {
    %c0_i32 = arith.constant 0 : i32
    %c0_i32_0 = arith.constant 0 : i32
    return %arg0, %c0_i32 : i32, i32
  }
}

</mosaic_0001>

<llo_original>
// kernel: positionwise_feed_forward.1
$region0: #{positionwise_feed_forward.1}
  #allocation0 [shape = 'u32[]', space=smem, size = 0x4, offset = 0x4, fixed_abs, tag = 'smem constant byte address 0x4 - core index']
  #allocation1 [shape = 'u32[144,128]{1,0:T(1,128)}', space=vmem, size = 0x12000, scoped, tag = 'internal scratch']
  %s0 = inlined_call_operand.vmem [shape: f32[16,128], index: 0, kind: input, shape index: {}, may-alias: {0,7}]
  %s1 = inlined_call_operand.hbm [shape: f32[128,128], index: 1, kind: input, shape index: {}]
  %s2 = inlined_call_operand.vmem [shape: f32[1,128], index: 2, kind: input, shape index: {}]
  %s3 = inlined_call_operand.hbm [shape: f32[128,128], index: 3, kind: input, shape index: {}]
  %s4 = inlined_call_operand.vmem [shape: f32[1,128], index: 4, kind: input, shape index: {}]
  %s5 = inlined_call_operand.vmem [shape: f32[1,128], index: 5, kind: input, shape index: {}]
  %s6 = inlined_call_operand.vmem [shape: f32[1,128], index: 6, kind: input, shape index: {}]
  %s7 = inlined_call_operand.vmem [shape: f32[16,128], index: 7, kind: output, shape index: {}, may-alias: {0,7}]
  %s8 = sld [smem:[#allocation0]]
  $region46: #{positionwise_feed_forward.1} parent=0
    _
  %s10 = ssub.s32 1, %s8
  %s11 = scalar_select 0, %s10, %s8
  $region1: #{positionwise_feed_forward.1} parent=0
    #allocation2 [shape = 'u8[65536]{0}', space=vmem, size = 0x10000, scoped, tag = 'input window, operand 1, single buffered']
    #allocation3 [shape = 's32[1]{0}', space=sflag, size = 0x4, scoped, tag = 'scoped memory for positionwise_feed_forward.1']
    #allocation4 [shape = 'u8[65536]{0}', space=vmem, size = 0x10000, scoped, tag = 'input window, operand 3, single buffered']
    #allocation5 [shape = 's32[1]{0}', space=sflag, size = 0x4, scoped, tag = 'scoped memory for positionwise_feed_forward.1']
    %12 = vsyncpa [#allocation3], 0
    %13 = vsyncpa [#allocation5], 0
    // Predicated region
    $region2: #{positionwise_feed_forward.1} parent=1 // pred_check
      _
    $region3: #{positionwise_feed_forward.1} parent=1 // pred_check_branch
      %15 = sbr.rel (0) target = $region5
    $region4: #{positionwise_feed_forward.1} parent=1 // pred_region
      _
    $region5: #{positionwise_feed_forward.1} parent=1 // pred_fallthru
      _
    // Predicated region
    $region6: #{positionwise_feed_forward.1} parent=1 // pred_check
      _
    $region7: #{positionwise_feed_forward.1} parent=1 // pred_check_branch
      %17 = sbr.rel (0) target = $region9
    $region8: #{positionwise_feed_forward.1} parent=1 // pred_region
      %s19 = ssub.s32 2048, 2048
      %20 = vsyncadd [#allocation3], %s19
      %s21 = sshll.u32 [#allocation2], 4
      %s22 = int_to_ptr.vmem [resolvable:$true] %s21
      %27 = dma.hbm_to_vmem [thread:$0]  %s1, 2048, %s22, [#allocation3], 128, 128, 8
    $region9: #{positionwise_feed_forward.1} parent=1 // pred_fallthru
      _
    // Predicated region
    $region10: #{positionwise_feed_forward.1} parent=1 // pred_check
      _
    $region11: #{positionwise_feed_forward.1} parent=1 // pred_check_branch
      %29 = sbr.rel (0) target = $region13
    $region12: #{positionwise_feed_forward.1} parent=1 // pred_region
      _
    $region13: #{positionwise_feed_forward.1} parent=1 // pred_fallthru
      _
    // Predicated region
    $region14: #{positionwise_feed_forward.1} parent=1 // pred_check
      _
    $region15: #{positionwise_feed_forward.1} parent=1 // pred_check_branch
      %31 = sbr.rel (0) target = $region17
    $region16: #{positionwise_feed_forward.1} parent=1 // pred_region
      %s33 = ssub.s32 2048, 2048
      %34 = vsyncadd [#allocation5], %s33
      %s35 = sshll.u32 [#allocation4], 4
      %s36 = int_to_ptr.vmem [resolvable:$true] %s35
      %41 = dma.hbm_to_vmem [thread:$0]  %s3, 2048, %s36, [#allocation5], 128, 128, 8
    $region17: #{positionwise_feed_forward.1} parent=1 // pred_fallthru
      _
    // Predicated region
    $region18: #{positionwise_feed_forward.1} parent=1 // pred_check
      _
    $region19: #{positionwise_feed_forward.1} parent=1 // pred_check_branch
      %43 = sbr.rel (0) target = $region21
    $region20: #{positionwise_feed_forward.1} parent=1 // pred_region
      _
    $region21: #{positionwise_feed_forward.1} parent=1 // pred_fallthru
      _
    // Predicated region
    $region22: #{positionwise_feed_forward.1} parent=1 // pred_check
      _
    $region23: #{positionwise_feed_forward.1} parent=1 // pred_check_branch
      %45 = sbr.rel (0) target = $region25
    $region24: #{positionwise_feed_forward.1} parent=1 // pred_region
      _
    $region25: #{positionwise_feed_forward.1} parent=1 // pred_fallthru
      _
    // Predicated region
    $region26: #{positionwise_feed_forward.1} parent=1 // pred_check
      _
    $region27: #{positionwise_feed_forward.1} parent=1 // pred_check_branch
      %47 = sbr.rel (0) target = $region29
    $region28: #{positionwise_feed_forward.1} parent=1 // pred_region
      _
    $region29: #{positionwise_feed_forward.1} parent=1 // pred_fallthru
      _
    // Predicated region
    $region30: #{positionwise_feed_forward.1} parent=1 // pred_check
      _
    $region31: #{positionwise_feed_forward.1} parent=1 // pred_check_branch
      %49 = sbr.rel (0) target = $region33
    $region32: #{positionwise_feed_forward.1} parent=1 // pred_region
      %50 = dma.done [#allocation3], 2048
    $region33: #{positionwise_feed_forward.1} parent=1 // pred_fallthru
      _
    // Predicated region
    $region34: #{positionwise_feed_forward.1} parent=1 // pred_check
      _
    $region35: #{positionwise_feed_forward.1} parent=1 // pred_check_branch
      %52 = sbr.rel (0) target = $region37
    $region36: #{positionwise_feed_forward.1} parent=1 // pred_region
      %53 = dma.done [#allocation5], 2048
    $region37: #{positionwise_feed_forward.1} parent=1 // pred_fallthru
      _
    %v54 = vld [vmem:[%s0] sm:$0xff]
    %v55 = vld [vmem:[%s0 + $0x8] sm:$0xff]
    %v56 = vld [vmem:[#allocation2] sm:$0xff]
    %v57 = vld [vmem:[#allocation2 + $0x8] sm:$0xff]
    %v58 = vld [vmem:[#allocation2 + $0x10] sm:$0xff]
    %v59 = vld [vmem:[#allocation2 + $0x18] sm:$0xff]
    %v60 = vld [vmem:[#allocation2 + $0x20] sm:$0xff]
    %v61 = vld [vmem:[#allocation2 + $0x28] sm:$0xff]
    %v62 = vld [vmem:[#allocation2 + $0x30] sm:$0xff]
    %v63 = vld [vmem:[#allocation2 + $0x38] sm:$0xff]
    %v64 = vld [vmem:[#allocation2 + $0x40] sm:$0xff]
    %v65 = vld [vmem:[#allocation2 + $0x48] sm:$0xff]
    %v66 = vld [vmem:[#allocation2 + $0x50] sm:$0xff]
    %v67 = vld [vmem:[#allocation2 + $0x58] sm:$0xff]
    %v68 = vld [vmem:[#allocation2 + $0x60] sm:$0xff]
    %v69 = vld [vmem:[#allocation2 + $0x68] sm:$0xff]
    %v70 = vld [vmem:[#allocation2 + $0x70] sm:$0xff]
    %v71 = vld [vmem:[#allocation2 + $0x78] sm:$0xff]
    %v72 = vld [vmem:[%s2] sm:$0x1]
    %v74 = vlaneseq
    %v75 = vshrl.u32 %v74, 7
    %v76 = vsub.s32 0, %v75
    %v77 = vrot.slane %v72, %v76
    %79 = vmatprep.subr.mxu0 0.0
    %80 = vmatpush1.msra.mxu0 %v56
    %81 = vmatprep.subr.mxu0 0.0
    %82 = vmatpush1.msra.mxu0 %v57
    %83 = vmatprep.subr.mxu0 0.0
    %84 = vmatpush1.msra.mxu0 %v58
    %85 = vmatprep.subr.mxu0 0.0
    %86 = vmatpush1.msra.mxu0 %v59
    %87 = vmatprep.subr.mxu0 0.0
    %88 = vmatpush1.msra.mxu0 %v60
    %89 = vmatprep.subr.mxu0 0.0
    %90 = vmatpush1.msra.mxu0 %v61
    %91 = vmatprep.subr.mxu0 0.0
    %92 = vmatpush1.msra.mxu0 %v62
    %93 = vmatprep.subr.mxu0 0.0
    %94 = vmatpush1.msra.mxu0 %v63
    %95 = vmatprep.subr.mxu0 0.0
    %96 = vmatpush1.msra.mxu0 %v64
    %97 = vmatprep.subr.mxu0 0.0
    %98 = vmatpush1.msra.mxu0 %v65
    %99 = vmatprep.subr.mxu0 0.0
    %100 = vmatpush1.msra.mxu0 %v66
    %101 = vmatprep.subr.mxu0 0.0
    %102 = vmatpush1.msra.mxu0 %v67
    %103 = vmatprep.subr.mxu0 0.0
    %104 = vmatpush1.msra.mxu0 %v68
    %105 = vmatprep.subr.mxu0 0.0
    %106 = vmatpush1.msra.mxu0 %v69
    %107 = vmatprep.subr.mxu0 0.0
    %108 = vmatpush1.msra.mxu0 %v70
    %109 = vmatprep.subr.mxu0 0.0
    %110 = vmatpush1.msra.mxu0 %v71
    %111 = vmatprep.subr.mxu0 0.0
    %112 = vmatpush1.msra.mxu0 0.0
    %113 = vmatprep.subr.mxu0 0.0
    %114 = vmatpush1.msra.mxu0 0.0
    %115 = vmatprep.subr.mxu0 0.0
    %116 = vmatpush1.msra.mxu0 0.0
    %117 = vmatprep.subr.mxu0 0.0
    %118 = vmatpush1.msra.mxu0 0.0
    %119 = vmatprep.subr.mxu0 0.0
    %120 = vmatpush1.msra.mxu0 0.0
    %121 = vmatprep.subr.mxu0 0.0
    %122 = vmatpush1.msra.mxu0 0.0
    %123 = vmatprep.subr.mxu0 0.0
    %124 = vmatpush1.msra.mxu0 0.0
    %125 = vmatprep.subr.mxu0 0.0
    %126 = vmatpush1.msra.mxu0 0.0
    %127 = vmatprep.subr.mxu0 0.0
    %128 = vmatpush1.msra.mxu0 0.0
    %129 = vmatprep.subr.mxu0 0.0
    %130 = vmatpush1.msra.mxu0 0.0
    %131 = vmatprep.subr.mxu0 0.0
    %132 = vmatpush1.msra.mxu0 0.0
    %133 = vmatprep.subr.mxu0 0.0
    %134 = vmatpush1.msra.mxu0 0.0
    %135 = vmatprep.subr.mxu0 0.0
    %136 = vmatpush1.msra.mxu0 0.0
    %137 = vmatprep.subr.mxu0 0.0
    %138 = vmatpush1.msra.mxu0 0.0
    %139 = vmatprep.subr.mxu0 0.0
    %140 = vmatpush1.msra.mxu0 0.0
    %141 = vmatprep.subr.mxu0 0.0
    %142 = vmatpush1.msra.mxu0 0.0
    %143 = vmatprep.mubr.f32.mxu0 0.0
    %144 = vmatmul.mubr.f32.gmra.mrb[0].mxu0 %v54
    %v145 = vpop.f32.mrb[0].mxu0
    %v146 = vadd.f32 %v77, %v145
    %v147 = vpop.f32.mrb[0].mxu0
    %148 = vmatprep.mubr.f32.mxu0 0.0
    %149 = vmatmul.mubr.f32.gmra.mrb[0].mxu0 %v55
    %v150 = vpop.f32.mrb[0].mxu0
    %v151 = vadd.f32 %v77, %v150
    %v152 = vpop.f32.mrb[0].mxu0
    %153 = vdwg.mxu0
    %v154 = vmax.f32 %v146, 0.0
    %v155 = vmax.f32 %v151, 0.0
    %v156 = vld [vmem:[#allocation4] sm:$0xff]
    %v157 = vld [vmem:[#allocation4 + $0x8] sm:$0xff]
    %v158 = vld [vmem:[#allocation4 + $0x10] sm:$0xff]
    %v159 = vld [vmem:[#allocation4 + $0x18] sm:$0xff]
    %v160 = vld [vmem:[#allocation4 + $0x20] sm:$0xff]
    %v161 = vld [vmem:[#allocation4 + $0x28] sm:$0xff]
    %v162 = vld [vmem:[#allocation4 + $0x30] sm:$0xff]
    %v163 = vld [vmem:[#allocation4 + $0x38] sm:$0xff]
    %v164 = vld [vmem:[#allocation4 + $0x40] sm:$0xff]
    %v165 = vld [vmem:[#allocation4 + $0x48] sm:$0xff]
    %v166 = vld [vmem:[#allocation4 + $0x50] sm:$0xff]
    %v167 = vld [vmem:[#allocation4 + $0x58] sm:$0xff]
    %v168 = vld [vmem:[#allocation4 + $0x60] sm:$0xff]
    %v169 = vld [vmem:[#allocation4 + $0x68] sm:$0xff]
    %v170 = vld [vmem:[#allocation4 + $0x70] sm:$0xff]
    %v171 = vld [vmem:[#allocation4 + $0x78] sm:$0xff]
    %v172 = vld [vmem:[%s4] sm:$0x1]
    %v174 = vlaneseq
    %v175 = vshrl.u32 %v174, 7
    %v176 = vsub.s32 0, %v175
    %v177 = vrot.slane %v172, %v176
    %179 = vmatprep.subr.mxu0 0.0
    %180 = vmatpush1.msra.mxu0 %v156
    %181 = vmatprep.subr.mxu0 0.0
    %182 = vmatpush1.msra.mxu0 %v157
    %183 = vmatprep.subr.mxu0 0.0
    %184 = vmatpush1.msra.mxu0 %v158
    %185 = vmatprep.subr.mxu0 0.0
    %186 = vmatpush1.msra.mxu0 %v159
    %187 = vmatprep.subr.mxu0 0.0
    %188 = vmatpush1.msra.mxu0 %v160
    %189 = vmatprep.subr.mxu0 0.0
    %190 = vmatpush1.msra.mxu0 %v161
    %191 = vmatprep.subr.mxu0 0.0
    %192 = vmatpush1.msra.mxu0 %v162
    %193 = vmatprep.subr.mxu0 0.0
    %194 = vmatpush1.msra.mxu0 %v163
    %195 = vmatprep.subr.mxu0 0.0
    %196 = vmatpush1.msra.mxu0 %v164
    %197 = vmatprep.subr.mxu0 0.0
    %198 = vmatpush1.msra.mxu0 %v165
    %199 = vmatprep.subr.mxu0 0.0
    %200 = vmatpush1.msra.mxu0 %v166
    %201 = vmatprep.subr.mxu0 0.0
    %202 = vmatpush1.msra.mxu0 %v167
    %203 = vmatprep.subr.mxu0 0.0
    %204 = vmatpush1.msra.mxu0 %v168
    %205 = vmatprep.subr.mxu0 0.0
    %206 = vmatpush1.msra.mxu0 %v169
    %207 = vmatprep.subr.mxu0 0.0
    %208 = vmatpush1.msra.mxu0 %v170
    %209 = vmatprep.subr.mxu0 0.0
    %210 = vmatpush1.msra.mxu0 %v171
    %211 = vmatprep.subr.mxu0 0.0
    %212 = vmatpush1.msra.mxu0 0.0
    %213 = vmatprep.subr.mxu0 0.0
    %214 = vmatpush1.msra.mxu0 0.0
    %215 = vmatprep.subr.mxu0 0.0
    %216 = vmatpush1.msra.mxu0 0.0
    %217 = vmatprep.subr.mxu0 0.0
    %218 = vmatpush1.msra.mxu0 0.0
    %219 = vmatprep.subr.mxu0 0.0
    %220 = vmatpush1.msra.mxu0 0.0
    %221 = vmatprep.subr.mxu0 0.0
    %222 = vmatpush1.msra.mxu0 0.0
    %223 = vmatprep.subr.mxu0 0.0
    %224 = vmatpush1.msra.mxu0 0.0
    %225 = vmatprep.subr.mxu0 0.0
    %226 = vmatpush1.msra.mxu0 0.0
    %227 = vmatprep.subr.mxu0 0.0
    %228 = vmatpush1.msra.mxu0 0.0
    %229 = vmatprep.subr.mxu0 0.0
    %230 = vmatpush1.msra.mxu0 0.0
    %231 = vmatprep.subr.mxu0 0.0
    %232 = vmatpush1.msra.mxu0 0.0
    %233 = vmatprep.subr.mxu0 0.0
    %234 = vmatpush1.msra.mxu0 0.0
    %235 = vmatprep.subr.mxu0 0.0
    %236 = vmatpush1.msra.mxu0 0.0
    %237 = vmatprep.subr.mxu0 0.0
    %238 = vmatpush1.msra.mxu0 0.0
    %239 = vmatprep.subr.mxu0 0.0
    %240 = vmatpush1.msra.mxu0 0.0
    %241 = vmatprep.subr.mxu0 0.0
    %242 = vmatpush1.msra.mxu0 0.0
    %243 = vmatprep.mubr.f32.mxu0 0.0
    %244 = vmatmul.mubr.f32.gmra.mrb[0].mxu0 %v154
    %v245 = vpop.f32.mrb[0].mxu0
    %v246 = vadd.f32 %v177, %v245
    %v247 = vpop.f32.mrb[0].mxu0
    %248 = vmatprep.mubr.f32.mxu0 0.0
    %249 = vmatmul.mubr.f32.gmra.mrb[0].mxu0 %v155
    %v250 = vpop.f32.mrb[0].mxu0
    %v251 = vadd.f32 %v177, %v250
    %v252 = vpop.f32.mrb[0].mxu0
    %253 = vdwg.mxu0
    %v254 = vadd.f32 %v246, %v54
    %v255 = vadd.f32 %v251, %v55
    %256 = vadd.xlane.f32.xlu0 %v254
    %v257 = vpop.xlane.xlu0 %256
    %258 = vadd.xlane.f32.xlu0 %v255
    %v259 = vpop.xlane.xlu0 %258
    %v260 = vmul.f32 %v257, 0.0625
    %v261 = vmul.f32 %v259, 0.0625
    %v262 = vmul.f32 %v254, %v254
    %v263 = vmul.f32 %v255, %v255
    %264 = vadd.xlane.f32.xlu0 %v262
    %v265 = vpop.xlane.xlu0 %264
    %266 = vadd.xlane.f32.xlu0 %v263
    %v267 = vpop.xlane.xlu0 %266
    %v268 = vmul.f32 %v265, 0.0625
    %v269 = vmul.f32 %v267, 0.0625
    %v270 = vmul.f32 %v260, %v260
    %v271 = vmul.f32 %v261, %v261
    %v272 = vsub.f32 %v268, %v270
    %v273 = vsub.f32 %v269, %v271
    %v274 = vsub.f32 %v254, %v260
    %v275 = vsub.f32 %v255, %v261
    %v276 = vadd.f32 %v272, 1e-06
    %v277 = vadd.f32 %v273, 1e-06
    %v278 = vrsqrt.pop %v276
    %v279 = vrsqrt.pop %v277
    %v280 = vmul.f32 %v274, %v278
    %v281 = vmul.f32 %v275, %v279
    %v282 = vld [vmem:[%s5] sm:$0x1]
    %v284 = vlaneseq
    %v285 = vshrl.u32 %v284, 7
    %v286 = vsub.s32 0, %v285
    %v287 = vrot.slane %v282, %v286
    %v289 = vmul.f32 %v280, %v287
    %v290 = vmul.f32 %v281, %v287
    %v291 = vld [vmem:[%s6] sm:$0x1]
    %v293 = vlaneseq
    %v294 = vshrl.u32 %v293, 7
    %v295 = vsub.s32 0, %v294
    %v296 = vrot.slane %v291, %v295
    %v298 = vadd.f32 %v289, %v296
    %v299 = vadd.f32 %v290, %v296
    %300 = vst [vmem:[%s7] sm:$0xff] %v298
    %301 = vst [vmem:[%s7 + $0x8] sm:$0xff] %v299
    // Predicated region
    $region38: #{positionwise_feed_forward.1} parent=1 // pred_check
      _
    $region39: #{positionwise_feed_forward.1} parent=1 // pred_check_branch
      %303 = sbr.rel (0) target = $region41
    $region40: #{positionwise_feed_forward.1} parent=1 // pred_region
      _
    $region41: #{positionwise_feed_forward.1} parent=1 // pred_fallthru
      _
    // Predicated region
    $region42: #{positionwise_feed_forward.1} parent=1 // pred_check
      _
    $region43: #{positionwise_feed_forward.1} parent=1 // pred_check_branch
      %305 = sbr.rel (0) target = $region45
    $region44: #{positionwise_feed_forward.1} parent=1 // pred_region
      _
    $region45: #{positionwise_feed_forward.1} parent=1 // pred_fallthru
      _
    %306 = vsyncpa [#allocation3], 1
    %307 = vsyncpa [#allocation5], 1

</llo_original>
